<compile_context>
chip_gen: v5e
topology: v5e:2x2
jax: 0.10.0
libtpu: 0.0.40
codegen_flags: <defaults>
</compile_context>

<pallas_src>
import functools
import math

import jax
import jax.numpy as jnp
from jax.experimental import pallas as pl
from jax.experimental.pallas import tpu as pltpu


def _multilinear_kernel(x_ref, w_ref, b_ref, o_ref):
    # x_ref: (tn, K), w_ref: (K, O), b_ref: (1, O), o_ref: (tn, O)
    acc = jnp.dot(x_ref[...], w_ref[...], preferred_element_type=jnp.float32)
    # Bias add / cast in f32 after the f32 MXU accumulate (v5e has no bf16 VALU).
    o_ref[...] = (acc + b_ref[...].astype(jnp.float32)).astype(o_ref.dtype)


@functools.partial(jax.jit, static_argnames=("parallel", "tile_n"))
def multilinear_forward(x, weight, bias, parallel, tile_n=None):
    """x: (N, *parallel, ni); weight: (*parallel, ni, no); bias: (*parallel, no)."""
    N = x.shape[0]
    ni = weight.shape[-2]
    no = weight.shape[-1]
    P = math.prod(parallel) if parallel else 1
    K = P * ni          # contraction dim of the block-diagonal matmul
    O = P * no          # output feature dim (P*no folded into the lane axis)

    # ---- layout plumbing (contiguous reshapes only; no transposes / HBM passes) ----
    x2 = x.reshape(N, K)                                   # (N, P*ni)

    # Block-diagonal weight: W_bd[p*ni + i, q*no + o] = (p == q) * weight[p, i, o]
    w_p = weight.reshape(P, ni, no)
    eye = jnp.eye(P, dtype=weight.dtype)
    w_bd = (eye[:, None, :, None] * w_p[:, :, None, :]).reshape(K, O)   # (P*ni, P*no)
    b2 = bias.reshape(1, O)                                             # (1, P*no)

    # ---- row-tile sizing ----
    itemsize = jnp.dtype(x.dtype).itemsize
    sub = max(8, 32 // itemsize)             # sublane multiple: 8 f32, 16 bf16, 32 i8/fp8

    def _round_up(v, m):
        return ((v + m - 1) // m) * m

    if tile_n is None:
        # ~2 MiB x row-tile: amortizes the ~600-cycle per-grid-step overhead
        # (measured ~85% of HBM roofline at ~2 MB tiles).
        target_bytes = 2 * 1024 * 1024
        tn = max(sub, target_bytes // max(1, K * itemsize))
    else:
        tn = max(sub, int(tile_n))
    tn = (tn // sub) * sub

    # v7x: keep >= 2 N tiles so the "parallel" axis can be sharded across both TCs.
    if N > sub:
        tn = min(tn, _round_up(pl.cdiv(N, 2), sub))

    # VMEM safety: 2x double-buffered (x tile + out tile) + resident weight/bias
    # kept under ~12 MiB (v5e's default scoped-VMEM limit is 16 MiB, the tightest).
    budget = 12 * 1024 * 1024 - 2 * (K * O + O) * itemsize
    max_tn = max(sub, ((budget // (2 * (K + O) * itemsize)) // sub) * sub)
    tn = min(tn, max_tn)

    grid = (pl.cdiv(N, tn),)                 # ragged last block: masked on writeback

    out = pl.pallas_call(
        _multilinear_kernel,
        out_shape=jax.ShapeDtypeStruct((N, O), x.dtype),
        grid_spec=pltpu.PrefetchScalarGridSpec(
            num_scalar_prefetch=0,
            grid=grid,
            in_specs=[
                pl.BlockSpec((tn, K), lambda i: (i, 0)),   # x row tile
                pl.BlockSpec((K, O), lambda i: (0, 0)),    # weight: resident, DMA'd once
                pl.BlockSpec((1, O), lambda i: (0, 0)),    # bias: resident, DMA'd once
            ],
            out_specs=pl.BlockSpec((tn, O), lambda i: (i, 0)),
        ),
        compiler_params=pltpu.CompilerParams(
            # Single N-tile axis is embarrassingly parallel -> megacore split on v7x.
            dimension_semantics=("parallel",),
        ),
    )(x2, w_bd, b2)                                        # (N, P*no)

    return out.reshape((N,) + tuple(parallel) + (no,))


if __name__ == "__main__":
    # Small shapes consistent with the module: batch N=300 (exercises the
    # ragged last block with the auto-sized tile), parallel=(3, 2),
    # in_features=32, out_features=16.
    N = 300
    parallel = (3, 2)
    ni, no = 32, 16

    key = jax.random.PRNGKey(0)
    k_w, k_b, k_x = jax.random.split(key, 3)

    # Deterministic parameter init mirroring reset_parameters(): uniform(-1, 1).
    weight = jax.random.uniform(
        k_w, parallel + (ni, no), dtype=jnp.float32, minval=-1.0, maxval=1.0
    )
    bias = jax.random.uniform(
        k_b, parallel + (no,), dtype=jnp.float32, minval=-1.0, maxval=1.0
    )
    x = jax.random.uniform(
        k_x, (N,) + parallel + (ni,), dtype=jnp.float32, minval=-1.0, maxval=1.0
    )

    out = multilinear_forward(x, weight, bias, parallel)
    out = jax.block_until_ready(out)

    # Reference check (pure JAX einsum, same semantics as the PyTorch forward).
    ref = jnp.einsum("...io,n...i->n...o", weight, x) + bias[None, ...]
    assert out.shape == (N,) + parallel + (no,)
    assert jnp.allclose(out, ref, atol=1e-5, rtol=1e-5)

    print("KERNEL_OK")
</pallas_src>

<mosaic_0001>
module attributes {stable_mosaic.version = 11 : i64} {
  func.func @_multilinear_kernel(%arg0: i32, %arg1: memref<152x192xf32, #tpu.memory_space<vmem>>, %arg2: memref<192x96xf32, #tpu.memory_space<vmem>>, %arg3: memref<1x96xf32, #tpu.memory_space<vmem>>, %arg4: memref<152x96xf32, #tpu.memory_space<vmem>>) attributes {dimension_semantics = [#tpu.dimension_semantics<parallel>], iteration_bounds = array<i64: 2>, scalar_prefetch = 0 : i64, scratch_operands = 0 : i64, tpu.core_type = #tpu.core_type<tc>, window_params = [{transform_indices = @transform_0, window_bounds = array<i64: 152, 192>}, {pipeline_mode = #tpu.pipeline_mode<synchronous>, transform_indices = @transform_1, window_bounds = array<i64: 192, 96>}, {pipeline_mode = #tpu.pipeline_mode<synchronous>, transform_indices = @transform_2, window_bounds = array<i64: 1, 96>}, {transform_indices = @transform_3, window_bounds = array<i64: 152, 96>}]} {
    %c0 = arith.constant 0 : index
    %c0_0 = arith.constant 0 : index
    %0 = vector.load %arg1[%c0, %c0_0] : memref<152x192xf32, #tpu.memory_space<vmem>>, vector<152x192xf32>
    %c0_1 = arith.constant 0 : index
    %c0_2 = arith.constant 0 : index
    %1 = vector.load %arg2[%c0_1, %c0_2] : memref<192x96xf32, #tpu.memory_space<vmem>>, vector<192x96xf32>
    %cst = arith.constant dense<0.000000e+00> : vector<152x96xf32>
    %2 = tpu.matmul %0, %1, %cst {dimension_numbers = #tpu.dot_dimension_numbers<[1], [0], [0], [1], [0, 0, 1, 1], [], []>} : vector<152x192xf32>, vector<192x96xf32>, vector<152x96xf32> -> vector<152x96xf32>
    %c0_3 = arith.constant 0 : index
    %c0_4 = arith.constant 0 : index
    %3 = vector.load %arg3[%c0_3, %c0_4] : memref<1x96xf32, #tpu.memory_space<vmem>>, vector<1x96xf32>
    %4 = vector.broadcast %3 : vector<1x96xf32> to vector<152x96xf32>
    %5 = arith.addf %2, %4 : vector<152x96xf32>
    %c0_5 = arith.constant 0 : index
    %c0_6 = arith.constant 0 : index
    %6 = vector.load %arg4[%c0_5, %c0_6] : memref<152x96xf32, #tpu.memory_space<vmem>>, vector<152x96xf32>
    tpu.vector_store %arg4[%c0_5, %c0_6], %5 {strides = array<i32>} : memref<152x96xf32, #tpu.memory_space<vmem>>, vector<152x96xf32>,
    return
  }
  func.func @transform_0(%arg0: i32) -> (i32, i32) {
    %c0_i32 = arith.constant 0 : i32
    %c0_i32_0 = arith.constant 0 : i32
    return %arg0, %c0_i32 : i32, i32
  }
  func.func @transform_1(%arg0: i32) -> (i32, i32) {
    %c0_i32 = arith.constant 0 : i32
    %c0_i32_0 = arith.constant 0 : i32
    %c0_i32_1 = arith.constant 0 : i32
    return %c0_i32, %c0_i32_0 : i32, i32
  }
  func.func @transform_2(%arg0: i32) -> (i32, i32) {
    %c0_i32 = arith.constant 0 : i32
    %c0_i32_0 = arith.constant 0 : i32
    %c0_i32_1 = arith.constant 0 : i32
    return %c0_i32, %c0_i32_0 : i32, i32
  }
  func.func @transform_3(%arg0: i32) -> (i32, i32) {
    %c0_i32 = arith.constant 0 : i32
    %c0_i32_0 = arith.constant 0 : i32
    return %arg0, %c0_i32 : i32, i32
  }
}

</mosaic_0001>

<llo_original>
// kernel: multilinear_forward.1
$region0: #{multilinear_forward.1}
  #allocation0 [shape = 'u32[]', space=smem, size = 0x4, offset = 0x4, fixed_abs, tag = 'smem constant byte address 0x4 - core index']
  #allocation1 [shape = 'u32[72,128]{1,0:T(1,128)}', space=vmem, size = 0x9000, scoped, tag = 'internal scratch']
  %s0 = inlined_call_operand.vmem [shape: f32[300,192], index: 0, kind: input, shape index: {}]
  %s1 = inlined_call_operand.vmem [shape: f32[192,96], index: 1, kind: input, shape index: {}]
  %s2 = inlined_call_operand.vmem [shape: f32[1,96], index: 2, kind: input, shape index: {}]
  %s3 = inlined_call_operand.vmem [shape: f32[300,96], index: 3, kind: output, shape index: {}]
  %s4 = sld [smem:[#allocation0]]
  $region45: #{multilinear_forward.1} parent=0
    _
  %s6 = ssub.s32 1, %s4
  %s7 = scalar_select 0, %s6, %s4
  loop: start=0, step=1, limit=4
  $region2: #{multilinear_forward.1} parent=0 // loop_pre_header
    _
  $region3: #{multilinear_forward.1} parent=0 // loop_header
    %s9 = sphi 0, %s13
    %p10 = scmp.ge.s32.totalorder %s9, 4
    %s19 = sphi 0, %s21
    %s22 = sphi 0, %s19
    %s23 = sphi 0, %s22
    %s39 = sphi 0, %s23
    %s43 = sphi 0, %s43
    %s45 = sphi 0, %s43
    %s46 = sphi 0, %s45
    %s60 = sphi 0, %s46
    %s64 = sphi 0, %s64
    %s66 = sphi 0, %s64
    %s67 = sphi 0, %s66
    %s81 = sphi 0, %s67
    %s87 = sphi 0, %s89
    %s90 = sphi 0, %s87
    %s91 = sphi 0, %s90
    %s107 = sphi 0, %s91
  $region4: #{multilinear_forward.1} parent=0 // loop_header_branch
    %12 = sbr.rel (%p10) target = $region8
  $region5: #{multilinear_forward.1} parent=0 // loop_body
    %s14 = ssub.s32 %s9, 1
    %s15 = ssub.s32 %s9, 2
    %s16 = sadd.s32 %s9, 1
    %s17 = ssub.s32 %s9, %s16
    %p18 = scmp.eq.s32.totalorder %s17, 0
    %s20 = sadd.s32 %s19, 1
    %s21 = scalar_select %p18, %s19, %s20
    %p24 = pneg %p18
    %p25 = scmp.eq.s32.totalorder %s9, 1
    %p26 = por %p24, %p25
    %p27 = scmp.ne.s32.totalorder %s19, %s22
    %p28 = scmp.eq.s32.totalorder %s9, 0
    %p29 = por %p27, %p28
    %p30 = scmp.ne.s32.totalorder %s19, %s22
    %p31 = scmp.eq.s32.totalorder %s14, 1
    %p32 = por %p30, %p31
    %p33 = scmp.ne.s32.totalorder %s22, %s23
    %p34 = scmp.eq.s32.totalorder %s14, 0
    %p35 = por %p33, %p34
    %p36 = scmp.ne.s32.totalorder %s22, %s23
    %p37 = scmp.eq.s32.totalorder %s15, 1
    %p38 = por %p36, %p37
    %p40 = scmp.ne.s32.totalorder %s23, %s39
    %p41 = scmp.eq.s32.totalorder %s15, 0
    %p42 = por %p40, %p41
    %s44 = sadd.s32 %s43, 1
    %p47 = scmp.eq.s32.totalorder %s9, 1
    %p48 = scmp.ne.s32.totalorder %s43, %s45
    %p49 = scmp.eq.s32.totalorder %s9, 0
    %p50 = por %p48, %p49
    %p51 = scmp.ne.s32.totalorder %s43, %s45
    %p52 = scmp.eq.s32.totalorder %s14, 1
    %p53 = por %p51, %p52
    %p54 = scmp.ne.s32.totalorder %s45, %s46
    %p55 = scmp.eq.s32.totalorder %s14, 0
    %p56 = por %p54, %p55
    %p57 = scmp.ne.s32.totalorder %s45, %s46
    %p58 = scmp.eq.s32.totalorder %s15, 1
    %p59 = por %p57, %p58
    %p61 = scmp.ne.s32.totalorder %s46, %s60
    %p62 = scmp.eq.s32.totalorder %s15, 0
    %p63 = por %p61, %p62
    %s65 = sadd.s32 %s64, 1
    %p68 = scmp.eq.s32.totalorder %s9, 1
    %p69 = scmp.ne.s32.totalorder %s64, %s66
    %p70 = scmp.eq.s32.totalorder %s9, 0
    %p71 = por %p69, %p70
    %p72 = scmp.ne.s32.totalorder %s64, %s66
    %p73 = scmp.eq.s32.totalorder %s14, 1
    %p74 = por %p72, %p73
    %p75 = scmp.ne.s32.totalorder %s66, %s67
    %p76 = scmp.eq.s32.totalorder %s14, 0
    %p77 = por %p75, %p76
    %p78 = scmp.ne.s32.totalorder %s66, %s67
    %p79 = scmp.eq.s32.totalorder %s15, 1
    %p80 = por %p78, %p79
    %p82 = scmp.ne.s32.totalorder %s67, %s81
    %p83 = scmp.eq.s32.totalorder %s15, 0
    %p84 = por %p82, %p83
    %s85 = ssub.s32 %s9, %s16
    %p86 = scmp.eq.s32.totalorder %s85, 0
    %s88 = sadd.s32 %s87, 1
    %s89 = scalar_select %p86, %s87, %s88
    %p92 = pneg %p86
    %p93 = scmp.eq.s32.totalorder %s9, 1
    %p94 = por %p92, %p93
    %p95 = scmp.ne.s32.totalorder %s87, %s90
    %p96 = scmp.eq.s32.totalorder %s9, 0
    %p97 = por %p95, %p96
    %p98 = scmp.ne.s32.totalorder %s87, %s90
    %p99 = scmp.eq.s32.totalorder %s14, 1
    %p100 = por %p98, %p99
    %p101 = scmp.ne.s32.totalorder %s90, %s91
    %p102 = scmp.eq.s32.totalorder %s14, 0
    %p103 = por %p101, %p102
    %p104 = scmp.ne.s32.totalorder %s90, %s91
    %p105 = scmp.eq.s32.totalorder %s15, 1
    %p106 = por %p104, %p105
    %p108 = scmp.ne.s32.totalorder %s91, %s107
    %p109 = scmp.eq.s32.totalorder %s15, 0
    %p110 = por %p108, %p109
    %p111 = scmp.le.s32.totalorder 1, %s9
    %p112 = scmp.lt.s32.totalorder %s9, 3
    %p113 = pnand %p111, %p112
    %p114 = pneg %p113
    // Predicated region
    $region9: #{multilinear_forward.1} parent=5 // pred_check
      _
    $region10: #{multilinear_forward.1} parent=5 // pred_check_branch
      %116 = sbr.rel (%p113) target = $region12
    $region11: #{multilinear_forward.1} parent=5 // pred_region
      %s117 = ssub.s32 %s9, 1
      // Predicated region
      $region13: #{multilinear_forward.1} parent=11 // pred_check
        %p118 = pneg %p56
      $region14: #{multilinear_forward.1} parent=11 // pred_check_branch
        %120 = sbr.rel (%p118) target = $region16
      $region15: #{multilinear_forward.1} parent=11 // pred_region
        _
      $region16: #{multilinear_forward.1} parent=11 // pred_fallthru
        _
      // Predicated region
      $region17: #{multilinear_forward.1} parent=11 // pred_check
        %p121 = pneg %p77
      $region18: #{multilinear_forward.1} parent=11 // pred_check_branch
        %123 = sbr.rel (%p121) target = $region20
      $region19: #{multilinear_forward.1} parent=11 // pred_region
        _
      $region20: #{multilinear_forward.1} parent=11 // pred_fallthru
        _
    $region12: #{multilinear_forward.1} parent=5 // pred_fallthru
      _
    %p124 = scmp.lt.s32.totalorder %s9, 2
    // Predicated region
    $region21: #{multilinear_forward.1} parent=5 // pred_check
      %p125 = pneg %p124
    $region22: #{multilinear_forward.1} parent=5 // pred_check_branch
      %127 = sbr.rel (%p125) target = $region24
    $region23: #{multilinear_forward.1} parent=5 // pred_region
      // Predicated region
      $region25: #{multilinear_forward.1} parent=23 // pred_check
        %p128 = pneg %p29
      $region26: #{multilinear_forward.1} parent=23 // pred_check_branch
        %130 = sbr.rel (%p128) target = $region28
      $region27: #{multilinear_forward.1} parent=23 // pred_region
        %s131 = smul.u32 19, %s9
        %p132 = scmp.lt.s32.totalorder %s131, 37
        %s133 = scalar_select %p132, %s131, 37
        %s134 = smul.addr %s133, 2
        %s135 = smul.addr %s134, 8
        %s136 = scalar_lea.vmem %s0, %s135
        %s137 = smul.u32 19, %s9
      $region28: #{multilinear_forward.1} parent=23 // pred_fallthru
        _
    $region24: #{multilinear_forward.1} parent=5 // pred_fallthru
      _
    %p138 = scmp.le.s32.totalorder 1, %s9
    %p139 = scmp.lt.s32.totalorder %s9, 3
    %p140 = pnand %p138, %p139
    %p141 = pneg %p140
    // Predicated region
    $region29: #{multilinear_forward.1} parent=5 // pred_check
      _
    $region30: #{multilinear_forward.1} parent=5 // pred_check_branch
      %143 = sbr.rel (%p140) target = $region32
    $region31: #{multilinear_forward.1} parent=5 // pred_region
      %s144 = ssub.s32 %s9, 1
      %s145 = smul.u32 19, %s14
      %p146 = scmp.lt.s32.totalorder %s145, 37
      %s147 = scalar_select %p146, %s145, 37
      %s148 = smul.addr %s147, 2
      %s149 = smul.addr %s148, 8
      %s150 = scalar_lea.vmem %s0, %s149
      %p151 = pneg %p35
      %p152 = pneg %p32
      %p153 = pneg %p56
      %p154 = pneg %p53
      %p155 = pneg %p77
      %p156 = pneg %p74
      %p157 = pneg %p103
      %p158 = pneg %p100
      %s159 = smul.u32 19, %s14
      %p160 = scmp.lt.s32.totalorder %s159, 37
      %s161 = scalar_select %p160, %s159, 37
      %s162 = smul.addr %s161, 8
      %s163 = scalar_lea.vmem %s3, %s162
      %s164 = smul.u32 19, %s14
      %p165 = scmp.lt.s32.totalorder %s164, 37
      %s166 = scalar_select %p165, %s164, 37
      %s167 = smul.addr %s166, 2
      %s168 = smul.addr %s167, 8
      %s169 = scalar_lea.vmem %s0, %s168
      %s170 = smul.u32 19, %s14
      %s171 = smul.u32 19, %s14
      %p172 = scmp.lt.s32.totalorder %s171, 37
      %s173 = scalar_select %p172, %s171, 37
      %s174 = smul.addr %s173, 8
      %s175 = scalar_lea.vmem %s3, %s174
      %s176 = smul.u32 19, %s14
      %v177 = vld [vmem:[%s169] sm:$0xff]
      %v178 = vld [vmem:[%s169 + $0x8] sm:$0xff]
      %v179 = vld [vmem:[%s169 + $0x10] sm:$0xff]
      %v180 = vld [vmem:[%s169 + $0x18] sm:$0xff]
      %v181 = vld [vmem:[%s169 + $0x20] sm:$0xff]
      %v182 = vld [vmem:[%s169 + $0x28] sm:$0xff]
      %v183 = vld [vmem:[%s169 + $0x30] sm:$0xff]
      %v184 = vld [vmem:[%s169 + $0x38] sm:$0xff]
      %v185 = vld [vmem:[%s169 + $0x40] sm:$0xff]
      %v186 = vld [vmem:[%s169 + $0x48] sm:$0xff]
      %v187 = vld [vmem:[%s169 + $0x50] sm:$0xff]
      %v188 = vld [vmem:[%s169 + $0x58] sm:$0xff]
      %v189 = vld [vmem:[%s169 + $0x60] sm:$0xff]
      %v190 = vld [vmem:[%s169 + $0x68] sm:$0xff]
      %v191 = vld [vmem:[%s169 + $0x70] sm:$0xff]
      %v192 = vld [vmem:[%s169 + $0x78] sm:$0xff]
      %v193 = vld [vmem:[%s169 + $0x80] sm:$0xff]
      %v194 = vld [vmem:[%s169 + $0x88] sm:$0xff]
      %v195 = vld [vmem:[%s169 + $0x90] sm:$0xff]
      %v196 = vld [vmem:[%s169 + $0x98] sm:$0xff]
      %v197 = vld [vmem:[%s169 + $0xa0] sm:$0xff]
      %v198 = vld [vmem:[%s169 + $0xa8] sm:$0xff]
      %v199 = vld [vmem:[%s169 + $0xb0] sm:$0xff]
      %v200 = vld [vmem:[%s169 + $0xb8] sm:$0xff]
      %v201 = vld [vmem:[%s169 + $0xc0] sm:$0xff]
      %v202 = vld [vmem:[%s169 + $0xc8] sm:$0xff]
      %v203 = vld [vmem:[%s169 + $0xd0] sm:$0xff]
      %v204 = vld [vmem:[%s169 + $0xd8] sm:$0xff]
      %v205 = vld [vmem:[%s169 + $0xe0] sm:$0xff]
      %v206 = vld [vmem:[%s169 + $0xe8] sm:$0xff]
      %v207 = vld [vmem:[%s169 + $0xf0] sm:$0xff]
      %v208 = vld [vmem:[%s169 + $0xf8] sm:$0xff]
      %v209 = vld [vmem:[%s169 + $0x100] sm:$0xff]
      %v210 = vld [vmem:[%s169 + $0x108] sm:$0xff]
      %v211 = vld [vmem:[%s169 + $0x110] sm:$0xff]
      %v212 = vld [vmem:[%s169 + $0x118] sm:$0xff]
      %v213 = vld [vmem:[%s169 + $0x120] sm:$0xff]
      %v214 = vld [vmem:[%s169 + $0x128] sm:$0xff]
      %v215 = vld [vmem:[%s1] sm:$0xff]
      %v216 = vld [vmem:[%s1 + $0x8] sm:$0xff]
      %v217 = vld [vmem:[%s1 + $0x10] sm:$0xff]
      %v218 = vld [vmem:[%s1 + $0x18] sm:$0xff]
      %v219 = vld [vmem:[%s1 + $0x20] sm:$0xff]
      %v220 = vld [vmem:[%s1 + $0x28] sm:$0xff]
      %v221 = vld [vmem:[%s1 + $0x30] sm:$0xff]
      %v222 = vld [vmem:[%s1 + $0x38] sm:$0xff]
      %v223 = vld [vmem:[%s1 + $0x40] sm:$0xff]
      %v224 = vld [vmem:[%s1 + $0x48] sm:$0xff]
      %v225 = vld [vmem:[%s1 + $0x50] sm:$0xff]
      %v226 = vld [vmem:[%s1 + $0x58] sm:$0xff]
      %v227 = vld [vmem:[%s1 + $0x60] sm:$0xff]
      %v228 = vld [vmem:[%s1 + $0x68] sm:$0xff]
      %v229 = vld [vmem:[%s1 + $0x70] sm:$0xff]
      %v230 = vld [vmem:[%s1 + $0x78] sm:$0xff]
      %v231 = vld [vmem:[%s1 + $0x80] sm:$0xff]
      %v232 = vld [vmem:[%s1 + $0x88] sm:$0xff]
      %v233 = vld [vmem:[%s1 + $0x90] sm:$0xff]
      %v234 = vld [vmem:[%s1 + $0x98] sm:$0xff]
      %v235 = vld [vmem:[%s1 + $0xa0] sm:$0xff]
      %v236 = vld [vmem:[%s1 + $0xa8] sm:$0xff]
      %v237 = vld [vmem:[%s1 + $0xb0] sm:$0xff]
      %v238 = vld [vmem:[%s1 + $0xb8] sm:$0xff]
      %v239 = vld [vmem:[%s2] sm:$0x1]
      %v241 = vperm.slane %v239, 0
      %vm243 = vcmask 523264
      %v245 = vsel %vm243, %v178, 0
      %v248 = vsel %vm243, %v180, 0
      %v251 = vsel %vm243, %v182, 0
      %v254 = vsel %vm243, %v184, 0
      %v257 = vsel %vm243, %v186, 0
      %v260 = vsel %vm243, %v188, 0
      %v263 = vsel %vm243, %v190, 0
      %v266 = vsel %vm243, %v192, 0
      %v269 = vsel %vm243, %v194, 0
      %v272 = vsel %vm243, %v196, 0
      %v275 = vsel %vm243, %v198, 0
      %v278 = vsel %vm243, %v200, 0
      %v281 = vsel %vm243, %v202, 0
      %v284 = vsel %vm243, %v204, 0
      %v287 = vsel %vm243, %v206, 0
      %v290 = vsel %vm243, %v208, 0
      %v293 = vsel %vm243, %v210, 0
      %v296 = vsel %vm243, %v212, 0
      %v299 = vsel %vm243, %v214, 0
      %301 = vmatpush.msra.mxu0 %v230
      %302 = vmatpush.msra.mxu0 %v229
      %303 = vmatpush.msra.mxu0 %v228
      %304 = vmatpush.msra.mxu0 %v227
      %305 = vmatpush.msra.mxu0 %v226
      %306 = vmatpush.msra.mxu0 %v225
      %307 = vmatpush.msra.mxu0 %v224
      %308 = vmatpush.msra.mxu0 %v223
      %309 = vmatpush.msra.mxu0 %v222
      %310 = vmatpush.msra.mxu0 %v221
      %311 = vmatpush.msra.mxu0 %v220
      %312 = vmatpush.msra.mxu0 %v219
      %313 = vmatpush.msra.mxu0 %v218
      %314 = vmatpush.msra.mxu0 %v217
      %315 = vmatpush.msra.mxu0 %v216
      %316 = vmatpush.msra.mxu0 %v215
      %317 = vmatmul.f32.gmra.mxu0 %v177
      %v318 = vpop.f32.mrf.mxu0
      %v319 = vadd.f32 %v241, %v318
      %320 = vmatmul.f32.gmra.mxu0 %v179
      %v321 = vpop.f32.mrf.mxu0
      %v322 = vadd.f32 %v241, %v321
      %323 = vmatmul.f32.gmra.mxu0 %v181
      %v324 = vpop.f32.mrf.mxu0
      %v325 = vadd.f32 %v241, %v324
      %326 = vmatmul.f32.gmra.mxu0 %v183
      %v327 = vpop.f32.mrf.mxu0
      %v328 = vadd.f32 %v241, %v327
      %329 = vmatmul.f32.gmra.mxu0 %v185
      %v330 = vpop.f32.mrf.mxu0
      %v331 = vadd.f32 %v241, %v330
      %332 = vmatmul.f32.gmra.mxu0 %v187
      %v333 = vpop.f32.mrf.mxu0
      %v334 = vadd.f32 %v241, %v333
      %335 = vmatmul.f32.gmra.mxu0 %v189
      %v336 = vpop.f32.mrf.mxu0
      %v337 = vadd.f32 %v241, %v336
      %338 = vmatmul.f32.gmra.mxu0 %v191
      %v339 = vpop.f32.mrf.mxu0
      %v340 = vadd.f32 %v241, %v339
      %341 = vmatmul.f32.gmra.mxu0 %v193
      %v342 = vpop.f32.mrf.mxu0
      %v343 = vadd.f32 %v241, %v342
      %344 = vmatmul.f32.gmra.mxu0 %v195
      %v345 = vpop.f32.mrf.mxu0
      %v346 = vadd.f32 %v241, %v345
      %347 = vmatmul.f32.gmra.mxu0 %v197
      %v348 = vpop.f32.mrf.mxu0
      %v349 = vadd.f32 %v241, %v348
      %350 = vmatmul.f32.gmra.mxu0 %v199
      %v351 = vpop.f32.mrf.mxu0
      %v352 = vadd.f32 %v241, %v351
      %353 = vmatmul.f32.gmra.mxu0 %v201
      %v354 = vpop.f32.mrf.mxu0
      %v355 = vadd.f32 %v241, %v354
      %356 = vmatmul.f32.gmra.mxu0 %v203
      %v357 = vpop.f32.mrf.mxu0
      %v358 = vadd.f32 %v241, %v357
      %359 = vmatmul.f32.gmra.mxu0 %v205
      %v360 = vpop.f32.mrf.mxu0
      %v361 = vadd.f32 %v241, %v360
      %362 = vmatmul.f32.gmra.mxu0 %v207
      %v363 = vpop.f32.mrf.mxu0
      %v364 = vadd.f32 %v241, %v363
      %365 = vmatmul.f32.gmra.mxu0 %v209
      %v366 = vpop.f32.mrf.mxu0
      %v367 = vadd.f32 %v241, %v366
      %368 = vmatmul.f32.gmra.mxu0 %v211
      %v369 = vpop.f32.mrf.mxu0
      %v370 = vadd.f32 %v241, %v369
      %371 = vmatmul.f32.gmra.mxu0 %v213
      %v372 = vpop.f32.mrf.mxu0
      %v373 = vadd.f32 %v241, %v372
      %374 = vdwg.mxu0
      %375 = vmatpush.msra.mxu0 0.0
      %376 = vmatpush.msra.mxu0 0.0
      %377 = vmatpush.msra.mxu0 0.0
      %378 = vmatpush.msra.mxu0 0.0
      %379 = vmatpush.msra.mxu0 0.0
      %380 = vmatpush.msra.mxu0 0.0
      %381 = vmatpush.msra.mxu0 0.0
      %382 = vmatpush.msra.mxu0 0.0
      %383 = vmatpush.msra.mxu0 %v238
      %384 = vmatpush.msra.mxu0 %v237
      %385 = vmatpush.msra.mxu0 %v236
      %386 = vmatpush.msra.mxu0 %v235
      %387 = vmatpush.msra.mxu0 %v234
      %388 = vmatpush.msra.mxu0 %v233
      %389 = vmatpush.msra.mxu0 %v232
      %390 = vmatpush.msra.mxu0 %v231
      %391 = vmatmul.f32.gmra.mxu0 %v245
      %v392 = vpop.f32.mrf.mxu0
      %v393 = vadd.f32 %v319, %v392
      %394 = vmatmul.f32.gmra.mxu0 %v248
      %v395 = vpop.f32.mrf.mxu0
      %v396 = vadd.f32 %v322, %v395
      %397 = vmatmul.f32.gmra.mxu0 %v251
      %v398 = vpop.f32.mrf.mxu0
      %v399 = vadd.f32 %v325, %v398
      %400 = vmatmul.f32.gmra.mxu0 %v254
      %v401 = vpop.f32.mrf.mxu0
      %v402 = vadd.f32 %v328, %v401
      %403 = vmatmul.f32.gmra.mxu0 %v257
      %v404 = vpop.f32.mrf.mxu0
      %v405 = vadd.f32 %v331, %v404
      %406 = vmatmul.f32.gmra.mxu0 %v260
      %v407 = vpop.f32.mrf.mxu0
      %v408 = vadd.f32 %v334, %v407
      %409 = vmatmul.f32.gmra.mxu0 %v263
      %v410 = vpop.f32.mrf.mxu0
      %v411 = vadd.f32 %v337, %v410
      %412 = vmatmul.f32.gmra.mxu0 %v266
      %v413 = vpop.f32.mrf.mxu0
      %v414 = vadd.f32 %v340, %v413
      %415 = vmatmul.f32.gmra.mxu0 %v269
      %v416 = vpop.f32.mrf.mxu0
      %v417 = vadd.f32 %v343, %v416
      %418 = vmatmul.f32.gmra.mxu0 %v272
      %v419 = vpop.f32.mrf.mxu0
      %v420 = vadd.f32 %v346, %v419
      %421 = vmatmul.f32.gmra.mxu0 %v275
      %v422 = vpop.f32.mrf.mxu0
      %v423 = vadd.f32 %v349, %v422
      %424 = vmatmul.f32.gmra.mxu0 %v278
      %v425 = vpop.f32.mrf.mxu0
      %v426 = vadd.f32 %v352, %v425
      %427 = vmatmul.f32.gmra.mxu0 %v281
      %v428 = vpop.f32.mrf.mxu0
      %v429 = vadd.f32 %v355, %v428
      %430 = vmatmul.f32.gmra.mxu0 %v284
      %v431 = vpop.f32.mrf.mxu0
      %v432 = vadd.f32 %v358, %v431
      %433 = vmatmul.f32.gmra.mxu0 %v287
      %v434 = vpop.f32.mrf.mxu0
      %v435 = vadd.f32 %v361, %v434
      %436 = vmatmul.f32.gmra.mxu0 %v290
      %v437 = vpop.f32.mrf.mxu0
      %v438 = vadd.f32 %v364, %v437
      %439 = vmatmul.f32.gmra.mxu0 %v293
      %v440 = vpop.f32.mrf.mxu0
      %v441 = vadd.f32 %v367, %v440
      %442 = vmatmul.f32.gmra.mxu0 %v296
      %v443 = vpop.f32.mrf.mxu0
      %v444 = vadd.f32 %v370, %v443
      %445 = vmatmul.f32.gmra.mxu0 %v299
      %v446 = vpop.f32.mrf.mxu0
      %v447 = vadd.f32 %v373, %v446
      %448 = vdwg.mxu0
      %vm449 = vcmask 785408
      %450 = vst.msk [vmem:[%s175] sm:$0xff] %vm449, %v393
      %451 = vst.msk [vmem:[%s175 + $0x8] sm:$0xff] %vm449, %v396
      %452 = vst.msk [vmem:[%s175 + $0x10] sm:$0xff] %vm449, %v399
      %453 = vst.msk [vmem:[%s175 + $0x18] sm:$0xff] %vm449, %v402
      %454 = vst.msk [vmem:[%s175 + $0x20] sm:$0xff] %vm449, %v405
      %455 = vst.msk [vmem:[%s175 + $0x28] sm:$0xff] %vm449, %v408
      %456 = vst.msk [vmem:[%s175 + $0x30] sm:$0xff] %vm449, %v411
      %457 = vst.msk [vmem:[%s175 + $0x38] sm:$0xff] %vm449, %v414
      %458 = vst.msk [vmem:[%s175 + $0x40] sm:$0xff] %vm449, %v417
      %459 = vst.msk [vmem:[%s175 + $0x48] sm:$0xff] %vm449, %v420
      %460 = vst.msk [vmem:[%s175 + $0x50] sm:$0xff] %vm449, %v423
      %461 = vst.msk [vmem:[%s175 + $0x58] sm:$0xff] %vm449, %v426
      %462 = vst.msk [vmem:[%s175 + $0x60] sm:$0xff] %vm449, %v429
      %463 = vst.msk [vmem:[%s175 + $0x68] sm:$0xff] %vm449, %v432
      %464 = vst.msk [vmem:[%s175 + $0x70] sm:$0xff] %vm449, %v435
      %465 = vst.msk [vmem:[%s175 + $0x78] sm:$0xff] %vm449, %v438
      %466 = vst.msk [vmem:[%s175 + $0x80] sm:$0xff] %vm449, %v441
      %467 = vst.msk [vmem:[%s175 + $0x88] sm:$0xff] %vm449, %v444
      %468 = vst.msk [vmem:[%s175 + $0x90] sm:$0xff] %vm449, %v447
      %s469 = smul.u32 19, %s14
      %p470 = scmp.lt.s32.totalorder %s469, 37
      %s471 = scalar_select %p470, %s469, 37
      %s472 = smul.addr %s471, 8
      %s473 = scalar_lea.vmem %s3, %s472
      // Predicated region
      $region33: #{multilinear_forward.1} parent=31 // pred_check
        %p474 = pneg %p100
      $region34: #{multilinear_forward.1} parent=31 // pred_check_branch
        %476 = sbr.rel (%p474) target = $region36
      $region35: #{multilinear_forward.1} parent=31 // pred_region
        %s477 = smul.u32 19, %s14
      $region36: #{multilinear_forward.1} parent=31 // pred_fallthru
        _
    $region32: #{multilinear_forward.1} parent=5 // pred_fallthru
      _
    %p478 = scmp.le.s32.totalorder 2, %s9
    // Predicated region
    $region37: #{multilinear_forward.1} parent=5 // pred_check
      %p479 = pneg %p478
    $region38: #{multilinear_forward.1} parent=5 // pred_check_branch
      %481 = sbr.rel (%p479) target = $region40
    $region39: #{multilinear_forward.1} parent=5 // pred_region
      %s482 = ssub.s32 %s9, 2
      // Predicated region
      $region41: #{multilinear_forward.1} parent=39 // pred_check
        %p483 = pneg %p106
      $region42: #{multilinear_forward.1} parent=39 // pred_check_branch
        %485 = sbr.rel (%p483) target = $region44
      $region43: #{multilinear_forward.1} parent=39 // pred_region
        %s486 = smul.u32 19, %s15
        %p487 = scmp.lt.s32.totalorder %s486, 37
        %s488 = scalar_select %p487, %s486, 37
        %s489 = smul.addr %s488, 8
        %s490 = scalar_lea.vmem %s3, %s489
      $region44: #{multilinear_forward.1} parent=39 // pred_fallthru
        _
    $region40: #{multilinear_forward.1} parent=5 // pred_fallthru
      _
  $region6: #{multilinear_forward.1} parent=0 // loop_footer
    %s13 = sadd.s32 1, %s9
  $region7: #{multilinear_forward.1} parent=0 // loop_footer_branch
    %8 = sbr.rel target = $region3
  $region8: #{multilinear_forward.1} parent=0 // loop_exit
    _

</llo_original>
